<compile_context>
chip_gen: v7x
topology: tpu7x:2x2x1
jax: 0.10.0
libtpu: 0.0.40
codegen_flags: <defaults>
</compile_context>

<pallas_src>
import functools

import numpy as np
import jax
import jax.numpy as jnp
from jax.experimental import pallas as pl
from jax.experimental.pallas import tpu as pltpu


def _round_up(x, m):
    return ((x + m - 1) // m) * m


def _round_down(x, m):
    return (x // m) * m


def _make_fusion_kernel(tm, h_in, seg_sizes, special_steps, matmul_dtype):
    """Builds the kernel body, closed over all static tiling data.

    seg_sizes     : (M0, M1, M2) python ints (rows of V_qd / E_s_KG / E_t_KG).
    special_steps : {grid_step: [(seg, src_row, dst_row, n_rows), ...]} for the
                    (at most ~3) tiles that straddle a segment boundary and/or
                    form the ragged final tile.  Fully static python data.
    """
    offs = (0, seg_sizes[0], seg_sizes[0] + seg_sizes[1])

    def kernel(v_hbm, es_hbm, et_hbm, w_ref, b_ref, o_ref, xbuf, sem):
        i = pl.program_id(0)
        srcs = (v_hbm, es_hbm, et_hbm)
        r = i * tm                              # first output row of this tile

        # ---- gather this tile's rows from the right segment(s) into VMEM ----
        if special_steps:
            is_generic = functools.reduce(
                jnp.logical_and, [i != s for s in special_steps])
        else:
            is_generic = None

        # Generic tiles: fully contained in one segment -> a single tm-row DMA
        # with a dynamic row offset.
        for k in range(3):
            if seg_sizes[k] == 0:
                continue
            lo = offs[k]
            hi = lo + seg_sizes[k]
            in_seg = jnp.logical_and(r >= lo, r < hi)
            cond = in_seg if is_generic is None else jnp.logical_and(in_seg, is_generic)

            @pl.when(cond)
            def _(k=k, lo=lo):
                cp = pltpu.make_async_copy(
                    srcs[k].at[pl.ds(r - lo, tm), :], xbuf, sem.at[0])
                cp.start()
                cp.wait()

        # Special tiles (boundary straddles / ragged tail): static piecewise
        # DMAs.  Serialized start+wait per piece (only a handful of steps).
        for step, pieces in special_steps.items():
            valid = sum(n for (_, _, _, n) in pieces)

            @pl.when(i == step)
            def _(pieces=pieces, valid=valid):
                if valid < tm:
                    # pad rows are masked on writeback; zero them for hygiene.
                    xbuf[pl.ds(valid, tm - valid), :] = jnp.zeros(
                        (tm - valid, h_in), xbuf.dtype)
                for (k, src0, dst0, n) in pieces:
                    cp = pltpu.make_async_copy(
                        srcs[k].at[pl.ds(src0, n), :],
                        xbuf.at[pl.ds(dst0, n), :],
                        sem.at[0])
                    cp.start()
                    cp.wait()

        # ---- Linear + Tanh: bf16 MXU inputs, f32 accumulate / bias / tanh ----
        x = xbuf[...].astype(matmul_dtype)
        acc = jnp.dot(x, w_ref[...], preferred_element_type=jnp.float32)
        acc = acc + b_ref[...]
        o_ref[...] = jnp.tanh(acc).astype(o_ref.dtype)

    return kernel


def language_level_fusion(V_qd, E_s_KG, E_t_KG, weight, bias, *,
                          tm=1024, matmul_dtype=jnp.bfloat16, out_dtype=None):
    """tanh(concat([V_qd, E_s_KG, E_t_KG], axis=0) @ weight.T + bias).

    weight: [H_out, H_in] (PyTorch nn.Linear layout); bias: [H_out].
    """
    H_out, H_in = weight.shape
    segs = (V_qd, E_s_KG, E_t_KG)
    assert all(t.ndim == 2 and t.shape[1] == H_in for t in segs), \
        "inputs must be [rows, H_in] matching weight.shape[1]"
    assert all(t.dtype == V_qd.dtype for t in segs), "inputs must share a dtype"
    assert bias.shape == (H_out,)
    # NOTE: keep H_in / H_out multiples of 128 (lane width) for lane-dense
    # loads/stores; production hidden_size=768 already is.

    in_dtype = V_qd.dtype
    out_dtype = in_dtype if out_dtype is None else out_dtype

    M0, M1, M2 = V_qd.shape[0], E_s_KG.shape[0], E_t_KG.shape[0]
    M = M0 + M1 + M2

    # ---- row-tile size: multiple of 8 rows, VMEM-budgeted for v5e's 16 MiB ----
    # Per-tile VMEM: x scratch (in_dtype) + double-buffered output block; the
    # pipeline-resident bf16 weight (double-buffered) is charged separately.
    w_bytes = 2 * H_in * H_out * np.dtype(matmul_dtype).itemsize
    bytes_per_row = (H_in * np.dtype(in_dtype).itemsize
                     + 2 * H_out * np.dtype(out_dtype).itemsize)
    tm_budget = max(8, (14 * 1024 * 1024 - w_bytes) // bytes_per_row)
    tm_eff = min(tm, tm_budget, _round_up(M, 8))
    tm_eff = max(8, _round_down(tm_eff, 8))
    # v7x megacore: guarantee >= 2 grid steps for non-trivial M so both
    # TensorCores get work (each step is self-contained, so "parallel" is safe).
    if pl.cdiv(M, tm_eff) < 2 and M > 8:
        tm_eff = max(8, _round_up(pl.cdiv(M, 2), 8))
    grid_m = pl.cdiv(M, tm_eff)

    # ---- static tiling plan: which grid steps need piecewise gathers ----
    offs = (0, M0, M0 + M1, M)

    def _pieces(r0, r1):
        ps = []
        for k in range(3):
            a, b = max(r0, offs[k]), min(r1, offs[k + 1])
            if b > a:
                ps.append((k, a - offs[k], a - r0, b - a))
        return ps

    special = {}
    for step in range(grid_m):
        r0 = step * tm_eff
        r1 = min(r0 + tm_eff, M)
        ps = _pieces(r0, r1)
        if len(ps) != 1 or (r1 - r0) != tm_eff:
            special[step] = ps

    # ---- params: one-time wrapper-side cast + transpose (tiny, H^2) ----
    w_t = weight.astype(matmul_dtype).T                 # [H_in, H_out]
    b2 = bias.astype(jnp.float32).reshape(1, H_out)

    kernel = _make_fusion_kernel(tm_eff, H_in, (M0, M1, M2), special, matmul_dtype)

    out = pl.pallas_call(
        kernel,
        out_shape=jax.ShapeDtypeStruct((M, H_out), out_dtype),
        grid_spec=pltpu.PrefetchScalarGridSpec(
            num_scalar_prefetch=0,
            grid=(grid_m,),
            in_specs=[
                pl.BlockSpec(memory_space=pl.ANY),             # V_qd   (HBM)
                pl.BlockSpec(memory_space=pl.ANY),             # E_s_KG (HBM)
                pl.BlockSpec(memory_space=pl.ANY),             # E_t_KG (HBM)
                pl.BlockSpec((H_in, H_out), lambda i: (0, 0)),  # weight, VMEM-resident
                pl.BlockSpec((1, H_out), lambda i: (0, 0)),     # bias,   VMEM-resident
            ],
            out_specs=pl.BlockSpec((tm_eff, H_out), lambda i: (i, 0)),
            scratch_shapes=[
                pltpu.VMEM((tm_eff, H_in), in_dtype),          # gathered row tile
                pltpu.SemaphoreType.DMA((1,)),
            ],
        ),
        compiler_params=pltpu.CompilerParams(
            dimension_semantics=("parallel",)),                # megacore on v7x
    )(V_qd, E_s_KG, E_t_KG, w_t, b2)
    return out


if __name__ == "__main__":
    key = jax.random.PRNGKey(0)
    hidden = 128                       # small but lane-dense stand-in for 768
    n_vqd, n_s, n_t = 41, 23, 17       # ragged sizes: exercise straddle + tail tiles

    k1, k2, k3, kw, kb = jax.random.split(key, 5)
    V_qd = jax.random.normal(k1, (n_vqd, hidden), dtype=jnp.float32)
    E_s_KG = jax.random.normal(k2, (n_s, hidden), dtype=jnp.float32)
    E_t_KG = jax.random.normal(k3, (n_t, hidden), dtype=jnp.float32)

    # Deterministic parameters (same shapes as nn.Linear(hidden, hidden)).
    weight = jax.random.normal(kw, (hidden, hidden), dtype=jnp.float32) * 0.02
    bias = jax.random.normal(kb, (hidden,), dtype=jnp.float32) * 0.02

    # Small tm so generic, straddle and ragged-tail code paths all execute.
    out = language_level_fusion(V_qd, E_s_KG, E_t_KG, weight, bias, tm=16)
    out = jax.block_until_ready(out)

    # Reference 1: exact f32 module semantics (loose tol: kernel MXU inputs are bf16).
    x_f32 = jnp.concatenate([V_qd, E_s_KG, E_t_KG], axis=0)
    ref_f32 = jnp.tanh(x_f32 @ weight.T + bias)
    assert out.shape == ref_f32.shape, "output shape mismatch"
    assert jnp.allclose(out, ref_f32, atol=3e-2, rtol=3e-2), \
        "mismatch vs f32 module reference"

    # Reference 2: bf16-matched reference (tight tol).
    ref_bf16 = jnp.tanh(
        jnp.dot(x_f32.astype(jnp.bfloat16), weight.astype(jnp.bfloat16).T,
                preferred_element_type=jnp.float32) + bias)
    assert jnp.allclose(out, ref_bf16, atol=2e-3, rtol=2e-3), \
        "mismatch vs bf16-matched reference"

    print("KERNEL_OK")
</pallas_src>

<mosaic_0001>
module attributes {stable_mosaic.version = 11 : i64} {
  func.func @kernel(%arg0: i32, %arg1: memref<41x128xf32, #tpu.memory_space<any>>, %arg2: memref<23x128xf32, #tpu.memory_space<any>>, %arg3: memref<17x128xf32, #tpu.memory_space<any>>, %arg4: memref<128x128xbf16, #tpu.memory_space<vmem>>, %arg5: memref<1x128xf32, #tpu.memory_space<vmem>>, %arg6: memref<16x128xf32, #tpu.memory_space<vmem>>, %arg7: memref<16x128xf32, #tpu.memory_space<vmem>>, %arg8: memref<1x!tpu.dma_semaphore, #tpu.memory_space<semaphore_mem>>) attributes {dimension_semantics = [#tpu.dimension_semantics<parallel>], iteration_bounds = array<i64: 6>, scalar_prefetch = 0 : i64, scratch_operands = 2 : i64, tpu.core_type = #tpu.core_type<tc>, window_params = [{}, {}, {}, {pipeline_mode = #tpu.pipeline_mode<synchronous>, transform_indices = @transform_3, window_bounds = array<i64: 128, 128>}, {pipeline_mode = #tpu.pipeline_mode<synchronous>, transform_indices = @transform_4, window_bounds = array<i64: 1, 128>}, {transform_indices = @transform_5, window_bounds = array<i64: 16, 128>}]} {
    %c16_i32 = arith.constant 16 : i32
    %0 = arith.muli %arg0, %c16_i32 : i32
    %c2_i32 = arith.constant 2 : i32
    %1 = arith.cmpi ne, %arg0, %c2_i32 : i32
    %c5_i32 = arith.constant 5 : i32
    %2 = arith.cmpi ne, %arg0, %c5_i32 : i32
    %3 = arith.andi %1, %2 : i1
    %c0_i32 = arith.constant 0 : i32
    %4 = arith.cmpi sge, %0, %c0_i32 : i32
    %c41_i32 = arith.constant 41 : i32
    %5 = arith.cmpi slt, %0, %c41_i32 : i32
    %6 = arith.andi %4, %5 : i1
    %7 = arith.andi %6, %3 : i1
    %8 = arith.extui %7 : i1 to i32
    %c0_i32_0 = arith.constant 0 : i32
    %9 = arith.cmpi ne, %8, %c0_i32_0 : i32
    scf.if %9 {
      %c0_i32_16 = arith.constant 0 : i32
      %37 = arith.subi %0, %c0_i32_16 : i32
      %c0_i32_17 = arith.constant 0 : i32
      %c0_i32_18 = arith.constant 0 : i32
      %38 = tpu.memref_slice %arg1[%37, %c0_i32_18] : memref<41x128xf32, #tpu.memory_space<any>> -> memref<16x128xf32, #tpu.memory_space<any>>
      %39 = tpu.memref_slice %arg8[%c0_i32_17] : memref<1x!tpu.dma_semaphore, #tpu.memory_space<semaphore_mem>> -> memref<1x!tpu.dma_semaphore, #tpu.memory_space<semaphore_mem>>
      %40 = tpu.memref_squeeze %39 : memref<1x!tpu.dma_semaphore, #tpu.memory_space<semaphore_mem>> -> memref<!tpu.dma_semaphore, #tpu.memory_space<semaphore_mem>>
      tpu.enqueue_dma source(%38 : memref<16x128xf32, #tpu.memory_space<any>>) target(%arg7 : memref<16x128xf32, #tpu.memory_space<vmem>>) target_semaphore(%40 : memref<!tpu.dma_semaphore, #tpu.memory_space<semaphore_mem>>)
      %c0_i32_19 = arith.constant 0 : i32
      %c0_i32_20 = arith.constant 0 : i32
      %41 = tpu.memref_slice %arg1[%37, %c0_i32_20] : memref<41x128xf32, #tpu.memory_space<any>> -> memref<16x128xf32, #tpu.memory_space<any>>
      %42 = tpu.memref_slice %arg8[%c0_i32_19] : memref<1x!tpu.dma_semaphore, #tpu.memory_space<semaphore_mem>> -> memref<1x!tpu.dma_semaphore, #tpu.memory_space<semaphore_mem>>
      %43 = tpu.memref_squeeze %42 : memref<1x!tpu.dma_semaphore, #tpu.memory_space<semaphore_mem>> -> memref<!tpu.dma_semaphore, #tpu.memory_space<semaphore_mem>>
      tpu.wait_dma2 semaphore(%43 : memref<!tpu.dma_semaphore, #tpu.memory_space<semaphore_mem>>) src(%41 : memref<16x128xf32, #tpu.memory_space<any>>) dst(%arg7 : memref<16x128xf32, #tpu.memory_space<vmem>>)
    } else {
    }
    %c41_i32_1 = arith.constant 41 : i32
    %10 = arith.cmpi sge, %0, %c41_i32_1 : i32
    %c64_i32 = arith.constant 64 : i32
    %11 = arith.cmpi slt, %0, %c64_i32 : i32
    %12 = arith.andi %10, %11 : i1
    %13 = arith.andi %12, %3 : i1
    %14 = arith.extui %13 : i1 to i32
    %c0_i32_2 = arith.constant 0 : i32
    %15 = arith.cmpi ne, %14, %c0_i32_2 : i32
    scf.if %15 {
      %c41_i32_16 = arith.constant 41 : i32
      %37 = arith.subi %0, %c41_i32_16 : i32
      %c0_i32_17 = arith.constant 0 : i32
      %c0_i32_18 = arith.constant 0 : i32
      %38 = tpu.memref_slice %arg2[%37, %c0_i32_18] : memref<23x128xf32, #tpu.memory_space<any>> -> memref<16x128xf32, #tpu.memory_space<any>>
      %39 = tpu.memref_slice %arg8[%c0_i32_17] : memref<1x!tpu.dma_semaphore, #tpu.memory_space<semaphore_mem>> -> memref<1x!tpu.dma_semaphore, #tpu.memory_space<semaphore_mem>>
      %40 = tpu.memref_squeeze %39 : memref<1x!tpu.dma_semaphore, #tpu.memory_space<semaphore_mem>> -> memref<!tpu.dma_semaphore, #tpu.memory_space<semaphore_mem>>
      tpu.enqueue_dma source(%38 : memref<16x128xf32, #tpu.memory_space<any>>) target(%arg7 : memref<16x128xf32, #tpu.memory_space<vmem>>) target_semaphore(%40 : memref<!tpu.dma_semaphore, #tpu.memory_space<semaphore_mem>>)
      %c0_i32_19 = arith.constant 0 : i32
      %c0_i32_20 = arith.constant 0 : i32
      %41 = tpu.memref_slice %arg2[%37, %c0_i32_20] : memref<23x128xf32, #tpu.memory_space<any>> -> memref<16x128xf32, #tpu.memory_space<any>>
      %42 = tpu.memref_slice %arg8[%c0_i32_19] : memref<1x!tpu.dma_semaphore, #tpu.memory_space<semaphore_mem>> -> memref<1x!tpu.dma_semaphore, #tpu.memory_space<semaphore_mem>>
      %43 = tpu.memref_squeeze %42 : memref<1x!tpu.dma_semaphore, #tpu.memory_space<semaphore_mem>> -> memref<!tpu.dma_semaphore, #tpu.memory_space<semaphore_mem>>
      tpu.wait_dma2 semaphore(%43 : memref<!tpu.dma_semaphore, #tpu.memory_space<semaphore_mem>>) src(%41 : memref<16x128xf32, #tpu.memory_space<any>>) dst(%arg7 : memref<16x128xf32, #tpu.memory_space<vmem>>)
    } else {
    }
    %c64_i32_3 = arith.constant 64 : i32
    %16 = arith.cmpi sge, %0, %c64_i32_3 : i32
    %c81_i32 = arith.constant 81 : i32
    %17 = arith.cmpi slt, %0, %c81_i32 : i32
    %18 = arith.andi %16, %17 : i1
    %19 = arith.andi %18, %3 : i1
    %20 = arith.extui %19 : i1 to i32
    %c0_i32_4 = arith.constant 0 : i32
    %21 = arith.cmpi ne, %20, %c0_i32_4 : i32
    scf.if %21 {
      %c64_i32_16 = arith.constant 64 : i32
      %37 = arith.subi %0, %c64_i32_16 : i32
      %c0_i32_17 = arith.constant 0 : i32
      %c0_i32_18 = arith.constant 0 : i32
      %38 = tpu.memref_slice %arg3[%37, %c0_i32_18] : memref<17x128xf32, #tpu.memory_space<any>> -> memref<16x128xf32, #tpu.memory_space<any>>
      %39 = tpu.memref_slice %arg8[%c0_i32_17] : memref<1x!tpu.dma_semaphore, #tpu.memory_space<semaphore_mem>> -> memref<1x!tpu.dma_semaphore, #tpu.memory_space<semaphore_mem>>
      %40 = tpu.memref_squeeze %39 : memref<1x!tpu.dma_semaphore, #tpu.memory_space<semaphore_mem>> -> memref<!tpu.dma_semaphore, #tpu.memory_space<semaphore_mem>>
      tpu.enqueue_dma source(%38 : memref<16x128xf32, #tpu.memory_space<any>>) target(%arg7 : memref<16x128xf32, #tpu.memory_space<vmem>>) target_semaphore(%40 : memref<!tpu.dma_semaphore, #tpu.memory_space<semaphore_mem>>)
      %c0_i32_19 = arith.constant 0 : i32
      %c0_i32_20 = arith.constant 0 : i32
      %41 = tpu.memref_slice %arg3[%37, %c0_i32_20] : memref<17x128xf32, #tpu.memory_space<any>> -> memref<16x128xf32, #tpu.memory_space<any>>
      %42 = tpu.memref_slice %arg8[%c0_i32_19] : memref<1x!tpu.dma_semaphore, #tpu.memory_space<semaphore_mem>> -> memref<1x!tpu.dma_semaphore, #tpu.memory_space<semaphore_mem>>
      %43 = tpu.memref_squeeze %42 : memref<1x!tpu.dma_semaphore, #tpu.memory_space<semaphore_mem>> -> memref<!tpu.dma_semaphore, #tpu.memory_space<semaphore_mem>>
      tpu.wait_dma2 semaphore(%43 : memref<!tpu.dma_semaphore, #tpu.memory_space<semaphore_mem>>) src(%41 : memref<16x128xf32, #tpu.memory_space<any>>) dst(%arg7 : memref<16x128xf32, #tpu.memory_space<vmem>>)
    } else {
    }
    %c2_i32_5 = arith.constant 2 : i32
    %22 = arith.cmpi eq, %arg0, %c2_i32_5 : i32
    %23 = arith.extui %22 : i1 to i32
    %c0_i32_6 = arith.constant 0 : i32
    %24 = arith.cmpi ne, %23, %c0_i32_6 : i32
    scf.if %24 {
      %c0_i32_16 = arith.constant 0 : i32
      %c32_i32 = arith.constant 32 : i32
      %c0_i32_17 = arith.constant 0 : i32
      %37 = tpu.memref_slice %arg1[%c32_i32, %c0_i32_17] : memref<41x128xf32, #tpu.memory_space<any>> -> memref<9x128xf32, #tpu.memory_space<any>>
      %c0_i32_18 = arith.constant 0 : i32
      %c0_i32_19 = arith.constant 0 : i32
      %38 = tpu.memref_slice %arg7[%c0_i32_18, %c0_i32_19] : memref<16x128xf32, #tpu.memory_space<vmem>> -> memref<9x128xf32, #tpu.memory_space<vmem>>
      %39 = tpu.memref_slice %arg8[%c0_i32_16] : memref<1x!tpu.dma_semaphore, #tpu.memory_space<semaphore_mem>> -> memref<1x!tpu.dma_semaphore, #tpu.memory_space<semaphore_mem>>
      %40 = tpu.memref_squeeze %39 : memref<1x!tpu.dma_semaphore, #tpu.memory_space<semaphore_mem>> -> memref<!tpu.dma_semaphore, #tpu.memory_space<semaphore_mem>>
      tpu.enqueue_dma source(%37 : memref<9x128xf32, #tpu.memory_space<any>>) target(%38 : memref<9x128xf32, #tpu.memory_space<vmem>>) target_semaphore(%40 : memref<!tpu.dma_semaphore, #tpu.memory_space<semaphore_mem>>)
      %c0_i32_20 = arith.constant 0 : i32
      %c32_i32_21 = arith.constant 32 : i32
      %c0_i32_22 = arith.constant 0 : i32
      %41 = tpu.memref_slice %arg1[%c32_i32_21, %c0_i32_22] : memref<41x128xf32, #tpu.memory_space<any>> -> memref<9x128xf32, #tpu.memory_space<any>>
      %c0_i32_23 = arith.constant 0 : i32
      %c0_i32_24 = arith.constant 0 : i32
      %42 = tpu.memref_slice %arg7[%c0_i32_23, %c0_i32_24] : memref<16x128xf32, #tpu.memory_space<vmem>> -> memref<9x128xf32, #tpu.memory_space<vmem>>
      %43 = tpu.memref_slice %arg8[%c0_i32_20] : memref<1x!tpu.dma_semaphore, #tpu.memory_space<semaphore_mem>> -> memref<1x!tpu.dma_semaphore, #tpu.memory_space<semaphore_mem>>
      %44 = tpu.memref_squeeze %43 : memref<1x!tpu.dma_semaphore, #tpu.memory_space<semaphore_mem>> -> memref<!tpu.dma_semaphore, #tpu.memory_space<semaphore_mem>>
      tpu.wait_dma2 semaphore(%44 : memref<!tpu.dma_semaphore, #tpu.memory_space<semaphore_mem>>) src(%41 : memref<9x128xf32, #tpu.memory_space<any>>) dst(%42 : memref<9x128xf32, #tpu.memory_space<vmem>>)
      %c0_i32_25 = arith.constant 0 : i32
      %c0_i32_26 = arith.constant 0 : i32
      %c0_i32_27 = arith.constant 0 : i32
      %45 = tpu.memref_slice %arg2[%c0_i32_26, %c0_i32_27] : memref<23x128xf32, #tpu.memory_space<any>> -> memref<7x128xf32, #tpu.memory_space<any>>
      %c9_i32 = arith.constant 9 : i32
      %c0_i32_28 = arith.constant 0 : i32
      %46 = tpu.memref_slice %arg7[%c9_i32, %c0_i32_28] : memref<16x128xf32, #tpu.memory_space<vmem>> -> memref<7x128xf32, #tpu.memory_space<vmem>>
      %47 = tpu.memref_slice %arg8[%c0_i32_25] : memref<1x!tpu.dma_semaphore, #tpu.memory_space<semaphore_mem>> -> memref<1x!tpu.dma_semaphore, #tpu.memory_space<semaphore_mem>>
      %48 = tpu.memref_squeeze %47 : memref<1x!tpu.dma_semaphore, #tpu.memory_space<semaphore_mem>> -> memref<!tpu.dma_semaphore, #tpu.memory_space<semaphore_mem>>
      tpu.enqueue_dma source(%45 : memref<7x128xf32, #tpu.memory_space<any>>) target(%46 : memref<7x128xf32, #tpu.memory_space<vmem>>) target_semaphore(%48 : memref<!tpu.dma_semaphore, #tpu.memory_space<semaphore_mem>>)
      %c0_i32_29 = arith.constant 0 : i32
      %c0_i32_30 = arith.constant 0 : i32
      %c0_i32_31 = arith.constant 0 : i32
      %49 = tpu.memref_slice %arg2[%c0_i32_30, %c0_i32_31] : memref<23x128xf32, #tpu.memory_space<any>> -> memref<7x128xf32, #tpu.memory_space<any>>
      %c9_i32_32 = arith.constant 9 : i32
      %c0_i32_33 = arith.constant 0 : i32
      %50 = tpu.memref_slice %arg7[%c9_i32_32, %c0_i32_33] : memref<16x128xf32, #tpu.memory_space<vmem>> -> memref<7x128xf32, #tpu.memory_space<vmem>>
      %51 = tpu.memref_slice %arg8[%c0_i32_29] : memref<1x!tpu.dma_semaphore, #tpu.memory_space<semaphore_mem>> -> memref<1x!tpu.dma_semaphore, #tpu.memory_space<semaphore_mem>>
      %52 = tpu.memref_squeeze %51 : memref<1x!tpu.dma_semaphore, #tpu.memory_space<semaphore_mem>> -> memref<!tpu.dma_semaphore, #tpu.memory_space<semaphore_mem>>
      tpu.wait_dma2 semaphore(%52 : memref<!tpu.dma_semaphore, #tpu.memory_space<semaphore_mem>>) src(%49 : memref<7x128xf32, #tpu.memory_space<any>>) dst(%50 : memref<7x128xf32, #tpu.memory_space<vmem>>)
    } else {
    }
    %c5_i32_7 = arith.constant 5 : i32
    %25 = arith.cmpi eq, %arg0, %c5_i32_7 : i32
    %26 = arith.extui %25 : i1 to i32
    %c0_i32_8 = arith.constant 0 : i32
    %27 = arith.cmpi ne, %26, %c0_i32_8 : i32
    scf.if %27 {
      %cst_16 = arith.constant 0.000000e+00 : f32
      %37 = vector.broadcast %cst_16 : f32 to vector<15x128xf32>
      %c1 = arith.constant 1 : index
      %c0_17 = arith.constant 0 : index
      %38 = vector.load %arg7[%c1, %c0_17] : memref<16x128xf32, #tpu.memory_space<vmem>>, vector<15x128xf32>
      tpu.vector_store %arg7[%c1, %c0_17], %37 {strides = array<i32>} : memref<16x128xf32, #tpu.memory_space<vmem>>, vector<15x128xf32>,
      %c0_i32_18 = arith.constant 0 : i32
      %c16_i32_19 = arith.constant 16 : i32
      %c0_i32_20 = arith.constant 0 : i32
      %39 = tpu.memref_slice %arg3[%c16_i32_19, %c0_i32_20] : memref<17x128xf32, #tpu.memory_space<any>> -> memref<1x128xf32, #tpu.memory_space<any>>
      %c0_i32_21 = arith.constant 0 : i32
      %c0_i32_22 = arith.constant 0 : i32
      %40 = tpu.memref_slice %arg7[%c0_i32_21, %c0_i32_22] : memref<16x128xf32, #tpu.memory_space<vmem>> -> memref<1x128xf32, #tpu.memory_space<vmem>>
      %41 = tpu.memref_slice %arg8[%c0_i32_18] : memref<1x!tpu.dma_semaphore, #tpu.memory_space<semaphore_mem>> -> memref<1x!tpu.dma_semaphore, #tpu.memory_space<semaphore_mem>>
      %42 = tpu.memref_squeeze %41 : memref<1x!tpu.dma_semaphore, #tpu.memory_space<semaphore_mem>> -> memref<!tpu.dma_semaphore, #tpu.memory_space<semaphore_mem>>
      tpu.enqueue_dma source(%39 : memref<1x128xf32, #tpu.memory_space<any>>) target(%40 : memref<1x128xf32, #tpu.memory_space<vmem>>) target_semaphore(%42 : memref<!tpu.dma_semaphore, #tpu.memory_space<semaphore_mem>>)
      %c0_i32_23 = arith.constant 0 : i32
      %c16_i32_24 = arith.constant 16 : i32
      %c0_i32_25 = arith.constant 0 : i32
      %43 = tpu.memref_slice %arg3[%c16_i32_24, %c0_i32_25] : memref<17x128xf32, #tpu.memory_space<any>> -> memref<1x128xf32, #tpu.memory_space<any>>
      %c0_i32_26 = arith.constant 0 : i32
      %c0_i32_27 = arith.constant 0 : i32
      %44 = tpu.memref_slice %arg7[%c0_i32_26, %c0_i32_27] : memref<16x128xf32, #tpu.memory_space<vmem>> -> memref<1x128xf32, #tpu.memory_space<vmem>>
      %45 = tpu.memref_slice %arg8[%c0_i32_23] : memref<1x!tpu.dma_semaphore, #tpu.memory_space<semaphore_mem>> -> memref<1x!tpu.dma_semaphore, #tpu.memory_space<semaphore_mem>>
      %46 = tpu.memref_squeeze %45 : memref<1x!tpu.dma_semaphore, #tpu.memory_space<semaphore_mem>> -> memref<!tpu.dma_semaphore, #tpu.memory_space<semaphore_mem>>
      tpu.wait_dma2 semaphore(%46 : memref<!tpu.dma_semaphore, #tpu.memory_space<semaphore_mem>>) src(%43 : memref<1x128xf32, #tpu.memory_space<any>>) dst(%44 : memref<1x128xf32, #tpu.memory_space<vmem>>)
    } else {
    }
    %c0 = arith.constant 0 : index
    %c0_9 = arith.constant 0 : index
    %28 = vector.load %arg7[%c0, %c0_9] : memref<16x128xf32, #tpu.memory_space<vmem>>, vector<16x128xf32>
    %29 = arith.truncf %28 : vector<16x128xf32> to vector<16x128xbf16>
    %c0_10 = arith.constant 0 : index
    %c0_11 = arith.constant 0 : index
    %30 = vector.load %arg4[%c0_10, %c0_11] : memref<128x128xbf16, #tpu.memory_space<vmem>>, vector<128x128xbf16>
    %cst = arith.constant dense<0.000000e+00> : vector<16x128xf32>
    %31 = tpu.matmul %29, %30, %cst {dimension_numbers = #tpu.dot_dimension_numbers<[1], [0], [0], [1], [0, 0, 1, 1], [], []>} : vector<16x128xbf16>, vector<128x128xbf16>, vector<16x128xf32> -> vector<16x128xf32>
    %c0_12 = arith.constant 0 : index
    %c0_13 = arith.constant 0 : index
    %32 = vector.load %arg5[%c0_12, %c0_13] : memref<1x128xf32, #tpu.memory_space<vmem>>, vector<1x128xf32>
    %33 = vector.broadcast %32 : vector<1x128xf32> to vector<16x128xf32>
    %34 = arith.addf %31, %33 : vector<16x128xf32>
    %35 = math.tanh %34 : vector<16x128xf32>
    %c0_14 = arith.constant 0 : index
    %c0_15 = arith.constant 0 : index
    %36 = vector.load %arg6[%c0_14, %c0_15] : memref<16x128xf32, #tpu.memory_space<vmem>>, vector<16x128xf32>
    tpu.vector_store %arg6[%c0_14, %c0_15], %35 {strides = array<i32>} : memref<16x128xf32, #tpu.memory_space<vmem>>, vector<16x128xf32>,
    return
  }
  func.func @transform_3(%arg0: i32) -> (i32, i32) {
    %c0_i32 = arith.constant 0 : i32
    %c0_i32_0 = arith.constant 0 : i32
    %c0_i32_1 = arith.constant 0 : i32
    return %c0_i32, %c0_i32_0 : i32, i32
  }
  func.func @transform_4(%arg0: i32) -> (i32, i32) {
    %c0_i32 = arith.constant 0 : i32
    %c0_i32_0 = arith.constant 0 : i32
    %c0_i32_1 = arith.constant 0 : i32
    return %c0_i32, %c0_i32_0 : i32, i32
  }
  func.func @transform_5(%arg0: i32) -> (i32, i32) {
    %c0_i32 = arith.constant 0 : i32
    %c0_i32_0 = arith.constant 0 : i32
    return %arg0, %c0_i32 : i32, i32
  }
}

</mosaic_0001>

<llo_original>
// kernel: tpu_custom_call.1
$region0: #{tpu_custom_call.1}
  #allocation0 [shape = 'u32[]', space=smem, size = 0x4, offset = 0x4, fixed_abs, tag = 'smem constant byte address 0x4 - core index']
  #allocation1 [shape = 'u32[144,128]{1,0:T(1,128)}', space=vmem, size = 0x12000, scoped, tag = 'internal scratch']
  #allocation2 [shape = 'f32[16,128]{1,0:T(8,128)}', space=vmem, size = 0x2000, scoped, tag = 'scratch operand']
  #allocation3 [shape = 's32[1]{0}', space=sflag, size = 0x4, scoped, tag = 'scratch operand']
  #allocation8 [shape = 's32[]', space=sflag, size = 0x4, offset = 0, fixed_abs, tag = 'sflag constant byte address 0x0 - dummy sync flag']
  #allocation9 [shape = 's32[]', space=sflag, size = 0x4, offset = 0, fixed_abs, tag = 'sflag constant byte address 0x0 - dummy sync flag']
  #allocation10 [shape = 'u32[]', space=smem, size = 0x4, offset = 0x44, fixed_abs, tag = 'smem constant byte address 0x44 - assertion arg 0']
  #allocation11 [shape = 'u32[]', space=smem, size = 0x4, offset = 0x48, fixed_abs, tag = 'smem constant byte address 0x48 - assertion arg 1']
  #allocation12 [shape = 's32[]', space=sflag, size = 0x4, offset = 0, fixed_abs, tag = 'sflag constant byte address 0x0 - dummy sync flag']
  #allocation13 [shape = 's32[]', space=sflag, size = 0x4, offset = 0, fixed_abs, tag = 'sflag constant byte address 0x0 - dummy sync flag']
  #allocation14 [shape = 's32[]', space=sflag, size = 0x4, offset = 0, fixed_abs, tag = 'sflag constant byte address 0x0 - dummy sync flag']
  #allocation15 [shape = 's32[]', space=sflag, size = 0x4, offset = 0, fixed_abs, tag = 'sflag constant byte address 0x0 - dummy sync flag']
  #allocation16 [shape = 's32[]', space=sflag, size = 0x4, offset = 0, fixed_abs, tag = 'sflag constant byte address 0x0 - dummy sync flag']
  #allocation17 [shape = 's32[]', space=sflag, size = 0x4, offset = 0, fixed_abs, tag = 'sflag constant byte address 0x0 - dummy sync flag']
  #allocation18 [shape = 's32[]', space=sflag, size = 0x4, offset = 0, fixed_abs, tag = 'sflag constant byte address 0x0 - dummy sync flag']
  #allocation19 [shape = 's32[]', space=sflag, size = 0x4, offset = 0, fixed_abs, tag = 'sflag constant byte address 0x0 - dummy sync flag']
  #allocation20 [shape = 's32[]', space=sflag, size = 0x4, offset = 0, fixed_abs, tag = 'sflag constant byte address 0x0 - dummy sync flag']
  #allocation21 [shape = 's32[]', space=sflag, size = 0x4, offset = 0, fixed_abs, tag = 'sflag constant byte address 0x0 - dummy sync flag']
  %s0 = inlined_call_operand.hbm [shape: f32[41,128], index: 0, kind: input, shape index: {}]
  %s1 = inlined_call_operand.hbm [shape: f32[23,128], index: 1, kind: input, shape index: {}]
  %s2 = inlined_call_operand.hbm [shape: f32[17,128], index: 2, kind: input, shape index: {}]
  %s3 = inlined_call_operand.hbm [shape: bf16[128,128], index: 3, kind: input, shape index: {}]
  %s4 = inlined_call_operand.vmem [shape: f32[1,128], index: 4, kind: input, shape index: {}]
  %s5 = inlined_call_operand.hbm [shape: f32[81,128], index: 5, kind: output, shape index: {}]
  %s6 = sld [smem:[#allocation0]]
  $region89: #{tpu_custom_call.1} parent=0
    _
  %s8 = ssub.s32 1, %s6
  %s9 = scalar_select 0, %s8, %s6
  $region1: #{tpu_custom_call.1} parent=0
    #allocation4 [shape = 'u8[32768]{0}', space=vmem, size = 0x8000, scoped, tag = 'input window, operand 3, single buffered']
    #allocation5 [shape = 's32[2]{0}', space=sflag, size = 0x8, scoped, tag = 'scoped memory for tpu_custom_call.1']
    #allocation6 [shape = 's32[2]{0}', space=sflag, size = 0x8, scoped, tag = 'scoped memory for tpu_custom_call.1']
    #allocation7 [shape = 'u8[16384]{0}', space=vmem, size = 0x4000, scoped, tag = 'output window, operand 0']
    %10 = vsyncpa [#allocation5], 0
    %11 = vsyncpa [#allocation6], 0
    %s12 = scalar_lea.sflag [#allocation6], 1
    %13 = vsyncpa %s12, 0
    loop: start=0, step=1, limit=8
    $region2: #{tpu_custom_call.1} parent=1 // loop_pre_header
      _
    $region3: #{tpu_custom_call.1} parent=1 // loop_header
      %s15 = sphi 0, %s19
      %p16 = scmp.ge.s32.totalorder %s15, 8
      %s23 = sphi 0, %s23
      %s25 = sphi 0, %s23
      %s26 = sphi 0, %s25
      %s40 = sphi 0, %s26
      %s44 = sphi 0, %s44
      %s46 = sphi 0, %s44
      %s47 = sphi 0, %s46
      %s61 = sphi 0, %s47
      %s67 = sphi 0, %s69
      %s70 = sphi 0, %s67
      %s71 = sphi 0, %s70
      %s87 = sphi 0, %s71
    $region4: #{tpu_custom_call.1} parent=1 // loop_header_branch
      %18 = sbr.rel (%p16) target = $region8
    $region5: #{tpu_custom_call.1} parent=1 // loop_body
      %s20 = ssub.s32 %s15, 1
      %s21 = ssub.s32 %s15, 2
      %s22 = sadd.s32 %s15, 1
      %s24 = sadd.s32 %s23, 1
      %p27 = scmp.eq.s32.totalorder %s15, 5
      %p28 = scmp.ne.s32.totalorder %s23, %s25
      %p29 = scmp.eq.s32.totalorder %s15, 0
      %p30 = por %p28, %p29
      %p31 = scmp.ne.s32.totalorder %s23, %s25
      %p32 = scmp.eq.s32.totalorder %s20, 5
      %p33 = por %p31, %p32
      %p34 = scmp.ne.s32.totalorder %s25, %s26
      %p35 = scmp.eq.s32.totalorder %s20, 0
      %p36 = por %p34, %p35
      %p37 = scmp.ne.s32.totalorder %s25, %s26
      %p38 = scmp.eq.s32.totalorder %s21, 5
      %p39 = por %p37, %p38
      %p41 = scmp.ne.s32.totalorder %s26, %s40
      %p42 = scmp.eq.s32.totalorder %s21, 0
      %p43 = por %p41, %p42
      %s45 = sadd.s32 %s44, 1
      %p48 = scmp.eq.s32.totalorder %s15, 5
      %p49 = scmp.ne.s32.totalorder %s44, %s46
      %p50 = scmp.eq.s32.totalorder %s15, 0
      %p51 = por %p49, %p50
      %p52 = scmp.ne.s32.totalorder %s44, %s46
      %p53 = scmp.eq.s32.totalorder %s20, 5
      %p54 = por %p52, %p53
      %p55 = scmp.ne.s32.totalorder %s46, %s47
      %p56 = scmp.eq.s32.totalorder %s20, 0
      %p57 = por %p55, %p56
      %p58 = scmp.ne.s32.totalorder %s46, %s47
      %p59 = scmp.eq.s32.totalorder %s21, 5
      %p60 = por %p58, %p59
      %p62 = scmp.ne.s32.totalorder %s47, %s61
      %p63 = scmp.eq.s32.totalorder %s21, 0
      %p64 = por %p62, %p63
      %s65 = ssub.s32 %s15, %s22
      %p66 = scmp.eq.s32.totalorder %s65, 0
      %s68 = sadd.s32 %s67, 1
      %s69 = scalar_select %p66, %s67, %s68
      %p72 = pneg %p66
      %p73 = scmp.eq.s32.totalorder %s15, 5
      %p74 = por %p72, %p73
      %p75 = scmp.ne.s32.totalorder %s67, %s70
      %p76 = scmp.eq.s32.totalorder %s15, 0
      %p77 = por %p75, %p76
      %p78 = scmp.ne.s32.totalorder %s67, %s70
      %p79 = scmp.eq.s32.totalorder %s20, 5
      %p80 = por %p78, %p79
      %p81 = scmp.ne.s32.totalorder %s70, %s71
      %p82 = scmp.eq.s32.totalorder %s20, 0
      %p83 = por %p81, %p82
      %p84 = scmp.ne.s32.totalorder %s70, %s71
      %p85 = scmp.eq.s32.totalorder %s21, 5
      %p86 = por %p84, %p85
      %p88 = scmp.ne.s32.totalorder %s71, %s87
      %p89 = scmp.eq.s32.totalorder %s21, 0
      %p90 = por %p88, %p89
      %p91 = scmp.le.s32.totalorder 1, %s15
      %p92 = scmp.lt.s32.totalorder %s15, 7
      %p93 = pnand %p91, %p92
      %p94 = pneg %p93
      // Predicated region
      $region9: #{tpu_custom_call.1} parent=5 // pred_check
        _
      $region10: #{tpu_custom_call.1} parent=5 // pred_check_branch
        %96 = sbr.rel (%p93) target = $region12
      $region11: #{tpu_custom_call.1} parent=5 // pred_region
        %s97 = ssub.s32 %s15, 1
        // Predicated region
        $region13: #{tpu_custom_call.1} parent=11 // pred_check
          %p98 = pneg %p36
        $region14: #{tpu_custom_call.1} parent=11 // pred_check_branch
          %100 = sbr.rel (%p98) target = $region16
        $region15: #{tpu_custom_call.1} parent=11 // pred_region
          %s102 = ssub.s32 1024, 1024
          %103 = vsyncadd [#allocation5], %s102
          %s104 = sshll.u32 [#allocation4], 4
          %s105 = int_to_ptr.vmem [resolvable:$true] %s104
          %110 = dma.hbm_to_vmem [thread:$0]  %s3, 1024, %s105, [#allocation5], 64, 64, 4
        $region16: #{tpu_custom_call.1} parent=11 // pred_fallthru
          _
        // Predicated region
        $region17: #{tpu_custom_call.1} parent=11 // pred_check
          %p111 = pneg %p57
        $region18: #{tpu_custom_call.1} parent=11 // pred_check_branch
          %113 = sbr.rel (%p111) target = $region20
        $region19: #{tpu_custom_call.1} parent=11 // pred_region
          _
        $region20: #{tpu_custom_call.1} parent=11 // pred_fallthru
          _
      $region12: #{tpu_custom_call.1} parent=5 // pred_fallthru
        _
      %p114 = scmp.lt.s32.totalorder %s15, 6
      // Predicated region
      $region21: #{tpu_custom_call.1} parent=5 // pred_check
        %p115 = pneg %p114
      $region22: #{tpu_custom_call.1} parent=5 // pred_check_branch
        %117 = sbr.rel (%p115) target = $region24
      $region23: #{tpu_custom_call.1} parent=5 // pred_region
        _
      $region24: #{tpu_custom_call.1} parent=5 // pred_fallthru
        _
      %p118 = scmp.le.s32.totalorder 1, %s15
      %p119 = scmp.lt.s32.totalorder %s15, 7
      %p120 = pnand %p118, %p119
      %p121 = pneg %p120
      // Predicated region
      $region25: #{tpu_custom_call.1} parent=5 // pred_check
        _
      $region26: #{tpu_custom_call.1} parent=5 // pred_check_branch
        %123 = sbr.rel (%p120) target = $region28
      $region27: #{tpu_custom_call.1} parent=5 // pred_region
        %s124 = ssub.s32 %s15, 1
        // Predicated region
        $region29: #{tpu_custom_call.1} parent=27 // pred_check
          %p125 = pneg %p36
        $region30: #{tpu_custom_call.1} parent=27 // pred_check_branch
          %127 = sbr.rel (%p125) target = $region32
        $region31: #{tpu_custom_call.1} parent=27 // pred_region
          %128 = dma.done [#allocation5], 1024
        $region32: #{tpu_custom_call.1} parent=27 // pred_fallthru
          _
        %p129 = pneg %p36
        %p130 = pneg %p33
        %p131 = pneg %p57
        %p132 = pneg %p54
        %p133 = pneg %p83
        %p134 = pneg %p80
        %s135 = sand.u32 %s70, 1
        %s136 = scalar_lea.sflag [#allocation6], %s135
        %s137 = sand.u32 %s70, 1
        %s138 = smul.addr %s137, 16
        %s139 = scalar_lea.vmem [#allocation7], %s138
        %s140 = smul.u32 2, %s20
        %s141 = ssub.s32 11, %s140
        %p142 = scmp.lt.s32.totalorder %s141, 2
        %s143 = scalar_select %p142, %s141, 2
        %s144 = smul.u32 128, %s143
        %s146 = smul.u32 %s20, 16
        %p147 = scmp.ne.s32.totalorder %s20, 2
        %p148 = scmp.ne.s32.totalorder %s20, 5
        %p149 = pnand %p147, %p148
        %p150 = pneg %p149
        %p151 = scmp.ge.s32.totalorder %s146, 0
        %p152 = scmp.lt.s32.totalorder %s146, 41
        %p153 = pnand %p151, %p152
        %p154 = pneg %p153
        %p155 = pnand %p154, %p150
        %p156 = pneg %p155
        // Predicated region
        $region33: #{tpu_custom_call.1} parent=27 // pred_check
          _
        $region34: #{tpu_custom_call.1} parent=27 // pred_check_branch
          %158 = sbr.rel (%p155) target = $region36
        $region35: #{tpu_custom_call.1} parent=27 // pred_region
          %s159 = smul.addr %s146, 16
          %s160 = scalar_lea.hbm %s0, %s159
          // Predicated region
          $region37: #{tpu_custom_call.1} parent=35 // pred_check
            _
          $region38: #{tpu_custom_call.1} parent=35 // pred_check_branch
            %162 = sbr.rel target = $region40
          $region39: #{tpu_custom_call.1} parent=35 // pred_region
            %163 = sst [smem:[#allocation10]] [#allocation9]
            %164 = sst [smem:[#allocation11]] [#allocation8]
          $region40: #{tpu_custom_call.1} parent=35 // pred_fallthru
            _
          %166 = shalt.err (0)
          %s168 = sshll.u32 [#allocation2], 4
          %s169 = int_to_ptr.vmem [resolvable:$true] %s168
          %171 = dma.hbm_to_vmem [thread:$0]  %s160, 256, %s169, [#allocation3]
          %s172 = smul.u32 16, 1
          %s173 = sshll.u32 %s172, 4
          %174 = dma.done [#allocation3], %s173
        $region36: #{tpu_custom_call.1} parent=27 // pred_fallthru
          _
        %p175 = scmp.ge.s32.totalorder %s146, 41
        %p176 = scmp.lt.s32.totalorder %s146, 64
        %p177 = pnand %p175, %p176
        %p178 = pneg %p177
        %p179 = pnand %p178, %p150
        %p180 = pneg %p179
        // Predicated region
        $region41: #{tpu_custom_call.1} parent=27 // pred_check
          _
        $region42: #{tpu_custom_call.1} parent=27 // pred_check_branch
          %182 = sbr.rel (%p179) target = $region44
        $region43: #{tpu_custom_call.1} parent=27 // pred_region
          %s183 = ssub.s32 %s146, 41
          %s184 = smul.addr %s183, 16
          %s185 = scalar_lea.hbm %s1, %s184
          // Predicated region
          $region45: #{tpu_custom_call.1} parent=43 // pred_check
            _
          $region46: #{tpu_custom_call.1} parent=43 // pred_check_branch
            %187 = sbr.rel target = $region48
          $region47: #{tpu_custom_call.1} parent=43 // pred_region
            %188 = sst [smem:[#allocation10]] [#allocation13]
            %189 = sst [smem:[#allocation11]] [#allocation12]
          $region48: #{tpu_custom_call.1} parent=43 // pred_fallthru
            _
          %191 = shalt.err (0)
          %s193 = sshll.u32 [#allocation2], 4
          %s194 = int_to_ptr.vmem [resolvable:$true] %s193
          %196 = dma.hbm_to_vmem [thread:$0]  %s185, 256, %s194, [#allocation3]
          %s197 = smul.u32 16, 1
          %s198 = sshll.u32 %s197, 4
          %199 = dma.done [#allocation3], %s198
        $region44: #{tpu_custom_call.1} parent=27 // pred_fallthru
          _
        %p200 = scmp.ge.s32.totalorder %s146, 64
        %p201 = scmp.lt.s32.totalorder %s146, 81
        %p202 = pnand %p200, %p201
        %p203 = pneg %p202
        %p204 = pnand %p203, %p150
        %p205 = pneg %p204
        // Predicated region
        $region49: #{tpu_custom_call.1} parent=27 // pred_check
          _
        $region50: #{tpu_custom_call.1} parent=27 // pred_check_branch
          %207 = sbr.rel (%p204) target = $region52
        $region51: #{tpu_custom_call.1} parent=27 // pred_region
          %s208 = ssub.s32 %s146, 64
          %s209 = smul.addr %s208, 16
          %s210 = scalar_lea.hbm %s2, %s209
          // Predicated region
          $region53: #{tpu_custom_call.1} parent=51 // pred_check
            _
          $region54: #{tpu_custom_call.1} parent=51 // pred_check_branch
            %212 = sbr.rel target = $region56
          $region55: #{tpu_custom_call.1} parent=51 // pred_region
            %213 = sst [smem:[#allocation10]] [#allocation15]
            %214 = sst [smem:[#allocation11]] [#allocation14]
          $region56: #{tpu_custom_call.1} parent=51 // pred_fallthru
            _
          %216 = shalt.err (0)
          %s218 = sshll.u32 [#allocation2], 4
          %s219 = int_to_ptr.vmem [resolvable:$true] %s218
          %221 = dma.hbm_to_vmem [thread:$0]  %s210, 256, %s219, [#allocation3]
          %s222 = smul.u32 16, 1
          %s223 = sshll.u32 %s222, 4
          %224 = dma.done [#allocation3], %s223
        $region52: #{tpu_custom_call.1} parent=27 // pred_fallthru
          _
        %p225 = scmp.eq.s32.totalorder %s20, 2
        // Predicated region
        $region57: #{tpu_custom_call.1} parent=27 // pred_check
          %p226 = pneg %p225
        $region58: #{tpu_custom_call.1} parent=27 // pred_check_branch
          %228 = sbr.rel (%p226) target = $region60
        $region59: #{tpu_custom_call.1} parent=27 // pred_region
          %s229 = scalar_lea.hbm %s0, 512
          // Predicated region
          $region61: #{tpu_custom_call.1} parent=59 // pred_check
            _
          $region62: #{tpu_custom_call.1} parent=59 // pred_check_branch
            %231 = sbr.rel target = $region64
          $region63: #{tpu_custom_call.1} parent=59 // pred_region
            %232 = sst [smem:[#allocation10]] [#allocation17]
            %233 = sst [smem:[#allocation11]] [#allocation16]
          $region64: #{tpu_custom_call.1} parent=59 // pred_fallthru
            _
          %235 = shalt.err (0)
          %s237 = sshll.u32 [#allocation2], 4
          %s238 = int_to_ptr.vmem [resolvable:$true] %s237
          %240 = dma.hbm_to_vmem [thread:$0]  %s229, 144, %s238, [#allocation3]
          %s241 = smul.u32 9, 1
          %s242 = sshll.u32 %s241, 4
          %243 = dma.done [#allocation3], %s242
          %s244 = scalar_lea.vmem [#allocation2], 9
          // Predicated region
          $region65: #{tpu_custom_call.1} parent=59 // pred_check
            _
          $region66: #{tpu_custom_call.1} parent=59 // pred_check_branch
            %246 = sbr.rel target = $region68
          $region67: #{tpu_custom_call.1} parent=59 // pred_region
            %247 = sst [smem:[#allocation10]] [#allocation19]
            %248 = sst [smem:[#allocation11]] [#allocation18]
          $region68: #{tpu_custom_call.1} parent=59 // pred_fallthru
            _
          %250 = shalt.err (0)
          %s252 = sshll.u32 %s244, 4
          %s253 = int_to_ptr.vmem [resolvable:$true] %s252
          %255 = dma.hbm_to_vmem [thread:$0]  %s1, 112, %s253, [#allocation3]
          %s256 = smul.u32 7, 1
          %s257 = sshll.u32 %s256, 4
          %258 = dma.done [#allocation3], %s257
        $region60: #{tpu_custom_call.1} parent=27 // pred_fallthru
          _
        %p259 = scmp.eq.s32.totalorder %s20, 5
        // Predicated region
        $region69: #{tpu_custom_call.1} parent=27 // pred_check
          %p260 = pneg %p259
        $region70: #{tpu_custom_call.1} parent=27 // pred_check_branch
          %262 = sbr.rel (%p260) target = $region72
        $region71: #{tpu_custom_call.1} parent=27 // pred_region
          %263 = vst [vmem:[#allocation2 + $0x1] sm:$0xff] 0.0
          %264 = vst [vmem:[#allocation2 + $0x9] sm:$0x7f] 0.0
          %s265 = scalar_lea.hbm %s2, 256
          // Predicated region
          $region73: #{tpu_custom_call.1} parent=71 // pred_check
            _
          $region74: #{tpu_custom_call.1} parent=71 // pred_check_branch
            %267 = sbr.rel target = $region76
          $region75: #{tpu_custom_call.1} parent=71 // pred_region
            %268 = sst [smem:[#allocation10]] [#allocation21]
            %269 = sst [smem:[#allocation11]] [#allocation20]
          $region76: #{tpu_custom_call.1} parent=71 // pred_fallthru
            _
          %271 = shalt.err (0)
          %s273 = sshll.u32 [#allocation2], 4
          %s274 = int_to_ptr.vmem [resolvable:$true] %s273
          %276 = dma.hbm_to_vmem [thread:$0]  %s265, 16, %s274, [#allocation3]
          %s277 = smul.u32 1, 1
          %s278 = sshll.u32 %s277, 4
          %279 = dma.done [#allocation3], %s278
        $region72: #{tpu_custom_call.1} parent=27 // pred_fallthru
          _
        %v280 = vld [vmem:[#allocation2] sm:$0xff]
        %v281 = vld [vmem:[#allocation2 + $0x8] sm:$0xff]
        %v282 = vpack.c.bf16 %v281, %v280
        %v283 = vld [vmem:[#allocation4] sm:$0xf]
        %v284 = vld [vmem:[#allocation4 + $0x4] sm:$0xf]
        %v285 = vld [vmem:[#allocation4 + $0x8] sm:$0xf]
        %v286 = vld [vmem:[#allocation4 + $0xc] sm:$0xf]
        %v287 = vld [vmem:[#allocation4 + $0x10] sm:$0xf]
        %v288 = vld [vmem:[#allocation4 + $0x14] sm:$0xf]
        %v289 = vld [vmem:[#allocation4 + $0x18] sm:$0xf]
        %v290 = vld [vmem:[#allocation4 + $0x1c] sm:$0xf]
        %v291 = vld [vmem:[#allocation4 + $0x20] sm:$0xf]
        %v292 = vld [vmem:[#allocation4 + $0x24] sm:$0xf]
        %v293 = vld [vmem:[#allocation4 + $0x28] sm:$0xf]
        %v294 = vld [vmem:[#allocation4 + $0x2c] sm:$0xf]
        %v295 = vld [vmem:[#allocation4 + $0x30] sm:$0xf]
        %v296 = vld [vmem:[#allocation4 + $0x34] sm:$0xf]
        %v297 = vld [vmem:[#allocation4 + $0x38] sm:$0xf]
        %v298 = vld [vmem:[#allocation4 + $0x3c] sm:$0xf]
        %v299 = vld [vmem:[%s4] sm:$0x1]
        %v301 = vlaneseq
        %v302 = vshrl.u32 %v301, 7
        %v303 = vsub.s32 0, %v302
        %v304 = vrot.slane %v299, %v303
        %v322 = vunpack.c.l.b16 %v283
        %v323 = vunpack.c.l.b16 %v284
        %v324 = vunpack.c.l.b16 %v285
        %v325 = vunpack.c.l.b16 %v286
        %v326 = vunpack.c.l.b16 %v287
        %v327 = vunpack.c.l.b16 %v288
        %v328 = vunpack.c.l.b16 %v289
        %v329 = vunpack.c.l.b16 %v290
        %v330 = vunpack.c.l.b16 %v291
        %v331 = vunpack.c.l.b16 %v292
        %v332 = vunpack.c.l.b16 %v293
        %v333 = vunpack.c.l.b16 %v294
        %v334 = vunpack.c.l.b16 %v295
        %v335 = vunpack.c.l.b16 %v296
        %v336 = vunpack.c.l.b16 %v297
        %v337 = vunpack.c.l.b16 %v298
        %v338 = vpack.c.b16 %v323, %v322
        %v339 = vpack.c.b16 %v325, %v324
        %v340 = vpack.c.b16 %v327, %v326
        %v341 = vpack.c.b16 %v329, %v328
        %v342 = vpack.c.b16 %v331, %v330
        %v343 = vpack.c.b16 %v333, %v332
        %v344 = vpack.c.b16 %v335, %v334
        %v345 = vpack.c.b16 %v337, %v336
        %354 = vmatprep.subr.bf16.mxu0 0
        %355 = vmatpush1.bf16.msra.mxu0 %v338
        %356 = vmatprep.subr.bf16.mxu0 0
        %357 = vmatpush1.bf16.msra.mxu0 %v339
        %358 = vmatprep.subr.bf16.mxu0 0
        %359 = vmatpush1.bf16.msra.mxu0 %v340
        %360 = vmatprep.subr.bf16.mxu0 0
        %361 = vmatpush1.bf16.msra.mxu0 %v341
        %362 = vmatprep.subr.bf16.mxu0 0
        %363 = vmatpush1.bf16.msra.mxu0 %v342
        %364 = vmatprep.subr.bf16.mxu0 0
        %365 = vmatpush1.bf16.msra.mxu0 %v343
        %366 = vmatprep.subr.bf16.mxu0 0
        %367 = vmatpush1.bf16.msra.mxu0 %v344
        %368 = vmatprep.subr.bf16.mxu0 0
        %369 = vmatpush1.bf16.msra.mxu0 %v345
        %370 = vmatprep.subr.bf16.mxu0 0
        %371 = vmatpush1.bf16.msra.mxu0 0
        %372 = vmatprep.subr.bf16.mxu0 0
        %373 = vmatpush1.bf16.msra.mxu0 0
        %374 = vmatprep.subr.bf16.mxu0 0
        %375 = vmatpush1.bf16.msra.mxu0 0
        %376 = vmatprep.subr.bf16.mxu0 0
        %377 = vmatpush1.bf16.msra.mxu0 0
        %378 = vmatprep.subr.bf16.mxu0 0
        %379 = vmatpush1.bf16.msra.mxu0 0
        %380 = vmatprep.subr.bf16.mxu0 0
        %381 = vmatpush1.bf16.msra.mxu0 0
        %382 = vmatprep.subr.bf16.mxu0 0
        %383 = vmatpush1.bf16.msra.mxu0 0
        %384 = vmatprep.subr.bf16.mxu0 0
        %385 = vmatpush1.bf16.msra.mxu0 0
        %386 = vmatprep.mubr.bf16.mxu0 0
        %387 = vmatmul.mubr.bf16.gmra.mrb[0].mxu0 %v282
        %v388 = vpop.f32.mrb[0].mxu0
        %v389 = vadd.f32 %v304, %v388
        %v390 = vpop.f32.mrb[0].mxu0
        %v391 = vpop.f32.mrb[0].mxu0
        %v392 = vadd.f32 %v304, %v391
        %v393 = vpop.f32.mrb[0].mxu0
        %394 = vdwg.mxu0
        %v395 = vtanh.pop %v389
        %v396 = vtanh.pop %v392
        %397 = vst [vmem:[%s139] sm:$0xff] %v395
        %398 = vst [vmem:[%s139 + $0x8] sm:$0xff] %v396
        %s399 = sand.u32 %s70, 1
        %s400 = scalar_lea.sflag [#allocation6], %s399
        %s401 = sand.u32 %s70, 1
        %s402 = smul.addr %s401, 16
        %s403 = scalar_lea.vmem [#allocation7], %s402
        // Predicated region
        $region77: #{tpu_custom_call.1} parent=27 // pred_check
          %p404 = pneg %p80
        $region78: #{tpu_custom_call.1} parent=27 // pred_check_branch
          %406 = sbr.rel (%p404) target = $region80
        $region79: #{tpu_custom_call.1} parent=27 // pred_region
          %s407 = smul.u32 2, %s20
          %s408 = ssub.s32 11, %s407
          %p409 = scmp.lt.s32.totalorder %s408, 2
          %s410 = scalar_select %p409, %s408, 2
          %s411 = smul.u32 128, %s410
          %s413 = ssub.s32 256, %s411
          %414 = vsyncadd %s400, %s413
          %p415 = scmp.ne.s32.totalorder 0, %s411
          %s416 = smul.addr %s407, 128
          %s417 = scalar_lea.hbm %s5, %s416
          %s418 = smul.u32 8, %s410
          %s419 = sshll.u32 %s403, 4
          %s420 = int_to_ptr.vmem [resolvable:$true] %s419
          %s421 = sshll.u32 %s418, 4
          %425 = dma.vmem_to_hbm [thread:$0]  (%p415), %s420, %s421, %s417, %s400, 128, 128, 8
        $region80: #{tpu_custom_call.1} parent=27 // pred_fallthru
          _
      $region28: #{tpu_custom_call.1} parent=5 // pred_fallthru
        _
      %p426 = scmp.le.s32.totalorder 2, %s15
      // Predicated region
      $region81: #{tpu_custom_call.1} parent=5 // pred_check
        %p427 = pneg %p426
      $region82: #{tpu_custom_call.1} parent=5 // pred_check_branch
        %429 = sbr.rel (%p427) target = $region84
      $region83: #{tpu_custom_call.1} parent=5 // pred_region
        %s430 = ssub.s32 %s15, 2
        // Predicated region
        $region85: #{tpu_custom_call.1} parent=83 // pred_check
          %p431 = pneg %p86
        $region86: #{tpu_custom_call.1} parent=83 // pred_check_branch
          %433 = sbr.rel (%p431) target = $region88
        $region87: #{tpu_custom_call.1} parent=83 // pred_region
          %s434 = sand.u32 %s71, 1
          %s435 = scalar_lea.sflag [#allocation6], %s434
          %s436 = sand.u32 %s71, 1
          %s437 = smul.addr %s436, 16
          %s438 = scalar_lea.vmem [#allocation7], %s437
          %439 = dma.done %s435, 256
        $region88: #{tpu_custom_call.1} parent=83 // pred_fallthru
          _
      $region84: #{tpu_custom_call.1} parent=5 // pred_fallthru
        _
    $region6: #{tpu_custom_call.1} parent=1 // loop_footer
      %s19 = sadd.s32 1, %s15
    $region7: #{tpu_custom_call.1} parent=1 // loop_footer_branch
      %14 = sbr.rel target = $region3
    $region8: #{tpu_custom_call.1} parent=1 // loop_exit
      _
    %440 = vsyncpa [#allocation5], 1
    %s441 = scalar_lea.sflag [#allocation5], 1
    %442 = vsyncpa %s441, 1
    %443 = vsyncpa [#allocation6], 1
    %s444 = scalar_lea.sflag [#allocation6], 1
    %445 = vsyncpa %s444, 1
  %446 = vsyncmov [#allocation3]
  %s447 = vpop.sfrf %446
  %p448 = scmp.eq.s32.totalorder %s447, 0
  %p449 = pneg %p448
  %451 = shalt.err (%p449)

</llo_original>
